<compile_context>
chip_gen: v7x
topology: tpu7x:2x2x1
jax: 0.10.0
libtpu: 0.0.40
codegen_flags: <defaults>
</compile_context>

<pallas_src>
import functools

import jax
import jax.numpy as jnp
from jax.experimental import pallas as pl
from jax.experimental.pallas import tpu as pltpu


def _qkT_kernel(q_ref, k_ref, o_ref, *, compute_dtype):
    # q_ref: (GH, S, D)  -> x173 slice
    # k_ref: (GH, S, D)  -> x162 slice (transpose folded into the contraction)
    # o_ref: (GH, S, S)
    q = q_ref[...]
    k = k_ref[...]
    if compute_dtype != q.dtype:
        q = q.astype(compute_dtype)
        k = k.astype(compute_dtype)
    # Batched MXU matmul: contract on D (axis 2 of both), batch on GH (axis 0).
    # Explicit dot_general (NT form) so no XLU transpose / layout copy of k is
    # ever materialized; accumulation stays in f32 on the MXU.
    out = jax.lax.dot_general(
        q,
        k,
        dimension_numbers=(((2,), (2,)), ((0,), (0,))),
        preferred_element_type=jnp.float32,
    )
    o_ref[...] = out.astype(o_ref.dtype)


def transpose_matmul(x173, x162, heads_per_step=1, use_bf16_inputs=False):
    """Computes matmul(x173, x162.transpose(-1, -2)) for [B, H, S, D] inputs.

    heads_per_step=1 (grid = B*H steps) maximizes pipeline overlap of the
    dominant S*S output stores and gives v7x's two TensorCores multiple
    steps each.  use_bf16_inputs trades ~1e-2 relative input-rounding error
    for ~3x fewer MXU passes + half the input HBM bytes; it is off by
    default to preserve the module's f32 semantics.
    """
    B, H, S, D = x173.shape
    assert x162.shape == (B, H, S, D)
    G = B * H

    # Batch gh heads per grid step; keep >= 2 grid steps when possible so
    # v7x's two TensorCores both get work and single-TC chips still pipeline.
    gh = heads_per_step if (G % heads_per_step == 0 and G // heads_per_step >= 2) else 1
    if G % gh != 0:
        gh = 1
    num_steps = G // gh

    q = x173.reshape(G, S, D)
    k = x162.reshape(G, S, D)

    compute_dtype = jnp.bfloat16 if use_bf16_inputs else q.dtype
    out_dtype = jnp.float32  # module returns raw f32 scores

    in_bytes = 2 * G * S * D * q.dtype.itemsize
    out_bytes = G * S * S * jnp.dtype(out_dtype).itemsize
    flops = 2 * G * S * S * D

    kernel = functools.partial(_qkT_kernel, compute_dtype=compute_dtype)

    out = pl.pallas_call(
        kernel,
        out_shape=jax.ShapeDtypeStruct((G, S, S), out_dtype),
        grid_spec=pltpu.PrefetchScalarGridSpec(
            num_scalar_prefetch=0,
            grid=(num_steps,),
            in_specs=[
                pl.BlockSpec((gh, S, D), lambda g: (g, 0, 0)),
                pl.BlockSpec((gh, S, D), lambda g: (g, 0, 0)),
            ],
            out_specs=pl.BlockSpec((gh, S, S), lambda g: (g, 0, 0)),
        ),
        compiler_params=pltpu.CompilerParams(
            dimension_semantics=("parallel",)
        ),
        cost_estimate=pl.CostEstimate(
            flops=flops, transcendentals=0, bytes_accessed=in_bytes + out_bytes
        ),
    )(q, k)

    return out.reshape(B, H, S, S)


if __name__ == "__main__":
    key = jax.random.PRNGKey(0)
    k1, k2 = jax.random.split(key)

    # Shapes from the module: x162, x173 are [1, 4, 384, 64]
    B, H, S, D = 1, 4, 384, 64
    x162 = jax.random.normal(k1, (B, H, S, D), dtype=jnp.float32)
    x173 = jax.random.normal(k2, (B, H, S, D), dtype=jnp.float32)

    out = transpose_matmul(x173, x162)
    out = jax.block_until_ready(out)

    # Sanity check against plain-JAX reference
    ref = jnp.matmul(x173, jnp.swapaxes(x162, -1, -2))
    assert out.shape == (B, H, S, S)
    assert jnp.allclose(out, ref, atol=1e-4, rtol=1e-4)

    print("KERNEL_OK")
</pallas_src>

<mosaic_0001>
module attributes {stable_mosaic.version = 11 : i64} {
  func.func @_qkT_kernel(%arg0: i32, %arg1: memref<1x384x64xf32, #tpu.memory_space<vmem>>, %arg2: memref<1x384x64xf32, #tpu.memory_space<vmem>>, %arg3: memref<1x384x384xf32, #tpu.memory_space<vmem>>) attributes {dimension_semantics = [#tpu.dimension_semantics<parallel>], iteration_bounds = array<i64: 4>, scalar_prefetch = 0 : i64, scratch_operands = 0 : i64, tpu.core_type = #tpu.core_type<tc>, window_params = [{transform_indices = @transform_0, window_bounds = array<i64: 1, 384, 64>}, {transform_indices = @transform_1, window_bounds = array<i64: 1, 384, 64>}, {transform_indices = @transform_2, window_bounds = array<i64: 1, 384, 384>}]} {
    %c0 = arith.constant 0 : index
    %c0_0 = arith.constant 0 : index
    %c0_1 = arith.constant 0 : index
    %0 = vector.load %arg1[%c0, %c0_0, %c0_1] : memref<1x384x64xf32, #tpu.memory_space<vmem>>, vector<1x384x64xf32>
    %c0_2 = arith.constant 0 : index
    %c0_3 = arith.constant 0 : index
    %c0_4 = arith.constant 0 : index
    %1 = vector.load %arg2[%c0_2, %c0_3, %c0_4] : memref<1x384x64xf32, #tpu.memory_space<vmem>>, vector<1x384x64xf32>
    %cst = arith.constant dense<0.000000e+00> : vector<1x384x384xf32>
    %2 = tpu.matmul %0, %1, %cst {dimension_numbers = #tpu.dot_dimension_numbers<[2], [2], [1], [1], [0, 0, 0, 1, 1, 1], [0], [0]>} : vector<1x384x64xf32>, vector<1x384x64xf32>, vector<1x384x384xf32> -> vector<1x384x384xf32>
    %c0_5 = arith.constant 0 : index
    %c0_6 = arith.constant 0 : index
    %c0_7 = arith.constant 0 : index
    %3 = vector.load %arg3[%c0_5, %c0_6, %c0_7] : memref<1x384x384xf32, #tpu.memory_space<vmem>>, vector<1x384x384xf32>
    tpu.vector_store %arg3[%c0_5, %c0_6, %c0_7], %2 {strides = array<i32>} : memref<1x384x384xf32, #tpu.memory_space<vmem>>, vector<1x384x384xf32>,
    return
  }
  func.func @transform_0(%arg0: i32) -> (i32, i32, i32) {
    %c0_i32 = arith.constant 0 : i32
    %c0_i32_0 = arith.constant 0 : i32
    %c0_i32_1 = arith.constant 0 : i32
    return %arg0, %c0_i32, %c0_i32_0 : i32, i32, i32
  }
  func.func @transform_1(%arg0: i32) -> (i32, i32, i32) {
    %c0_i32 = arith.constant 0 : i32
    %c0_i32_0 = arith.constant 0 : i32
    %c0_i32_1 = arith.constant 0 : i32
    return %arg0, %c0_i32, %c0_i32_0 : i32, i32, i32
  }
  func.func @transform_2(%arg0: i32) -> (i32, i32, i32) {
    %c0_i32 = arith.constant 0 : i32
    %c0_i32_0 = arith.constant 0 : i32
    %c0_i32_1 = arith.constant 0 : i32
    return %arg0, %c0_i32, %c0_i32_0 : i32, i32, i32
  }
}

</mosaic_0001>

<llo_original>
// kernel: tpu_custom_call.1
$region0: #{tpu_custom_call.1}
  #allocation0 [shape = 'u32[]', space=smem, size = 0x4, offset = 0x4, fixed_abs, tag = 'smem constant byte address 0x4 - core index']
  #allocation1 [shape = 'u32[144,128]{1,0:T(1,128)}', space=vmem, size = 0x12000, scoped, tag = 'internal scratch']
  %s0 = inlined_call_operand.vmem [shape: f32[4,384,64], index: 0, kind: input, shape index: {}]
  %s1 = inlined_call_operand.vmem [shape: f32[4,384,64], index: 1, kind: input, shape index: {}]
  %s2 = inlined_call_operand.hbm [shape: f32[4,384,384], index: 2, kind: output, shape index: {}]
  %s3 = sld [smem:[#allocation0]]
  $region41: #{tpu_custom_call.1} parent=0
    _
  %s5 = ssub.s32 1, %s3
  %s6 = scalar_select 0, %s5, %s3
  $region1: #{tpu_custom_call.1} parent=0
    #allocation2 [shape = 'u8[1179648]{0}', space=vmem, size = 0x120000, scoped, tag = 'output window, operand 0']
    #allocation3 [shape = 's32[2]{0}', space=sflag, size = 0x8, scoped, tag = 'scoped memory for tpu_custom_call.1']
    %7 = vsyncpa [#allocation3], 0
    %s8 = scalar_lea.sflag [#allocation3], 1
    %9 = vsyncpa %s8, 0
    loop: start=0, step=1, limit=6
    $region2: #{tpu_custom_call.1} parent=1 // loop_pre_header
      _
    $region3: #{tpu_custom_call.1} parent=1 // loop_header
      %s11 = sphi 0, %s15
      %p12 = scmp.ge.s32.totalorder %s11, 6
      %s21 = sphi 0, %s23
      %s24 = sphi 0, %s21
      %s25 = sphi 0, %s24
      %s41 = sphi 0, %s25
      %s47 = sphi 0, %s49
      %s50 = sphi 0, %s47
      %s51 = sphi 0, %s50
      %s67 = sphi 0, %s51
      %s73 = sphi 0, %s75
      %s76 = sphi 0, %s73
      %s77 = sphi 0, %s76
      %s93 = sphi 0, %s77
    $region4: #{tpu_custom_call.1} parent=1 // loop_header_branch
      %14 = sbr.rel (%p12) target = $region8
    $region5: #{tpu_custom_call.1} parent=1 // loop_body
      %s16 = ssub.s32 %s11, 1
      %s17 = ssub.s32 %s11, 2
      %s18 = sadd.s32 %s11, 1
      %s19 = ssub.s32 %s11, %s18
      %p20 = scmp.eq.s32.totalorder %s19, 0
      %s22 = sadd.s32 %s21, 1
      %s23 = scalar_select %p20, %s21, %s22
      %p26 = pneg %p20
      %p27 = scmp.eq.s32.totalorder %s11, 3
      %p28 = por %p26, %p27
      %p29 = scmp.ne.s32.totalorder %s21, %s24
      %p30 = scmp.eq.s32.totalorder %s11, 0
      %p31 = por %p29, %p30
      %p32 = scmp.ne.s32.totalorder %s21, %s24
      %p33 = scmp.eq.s32.totalorder %s16, 3
      %p34 = por %p32, %p33
      %p35 = scmp.ne.s32.totalorder %s24, %s25
      %p36 = scmp.eq.s32.totalorder %s16, 0
      %p37 = por %p35, %p36
      %p38 = scmp.ne.s32.totalorder %s24, %s25
      %p39 = scmp.eq.s32.totalorder %s17, 3
      %p40 = por %p38, %p39
      %p42 = scmp.ne.s32.totalorder %s25, %s41
      %p43 = scmp.eq.s32.totalorder %s17, 0
      %p44 = por %p42, %p43
      %s45 = ssub.s32 %s11, %s18
      %p46 = scmp.eq.s32.totalorder %s45, 0
      %s48 = sadd.s32 %s47, 1
      %s49 = scalar_select %p46, %s47, %s48
      %p52 = pneg %p46
      %p53 = scmp.eq.s32.totalorder %s11, 3
      %p54 = por %p52, %p53
      %p55 = scmp.ne.s32.totalorder %s47, %s50
      %p56 = scmp.eq.s32.totalorder %s11, 0
      %p57 = por %p55, %p56
      %p58 = scmp.ne.s32.totalorder %s47, %s50
      %p59 = scmp.eq.s32.totalorder %s16, 3
      %p60 = por %p58, %p59
      %p61 = scmp.ne.s32.totalorder %s50, %s51
      %p62 = scmp.eq.s32.totalorder %s16, 0
      %p63 = por %p61, %p62
      %p64 = scmp.ne.s32.totalorder %s50, %s51
      %p65 = scmp.eq.s32.totalorder %s17, 3
      %p66 = por %p64, %p65
      %p68 = scmp.ne.s32.totalorder %s51, %s67
      %p69 = scmp.eq.s32.totalorder %s17, 0
      %p70 = por %p68, %p69
      %s71 = ssub.s32 %s11, %s18
      %p72 = scmp.eq.s32.totalorder %s71, 0
      %s74 = sadd.s32 %s73, 1
      %s75 = scalar_select %p72, %s73, %s74
      %p78 = pneg %p72
      %p79 = scmp.eq.s32.totalorder %s11, 3
      %p80 = por %p78, %p79
      %p81 = scmp.ne.s32.totalorder %s73, %s76
      %p82 = scmp.eq.s32.totalorder %s11, 0
      %p83 = por %p81, %p82
      %p84 = scmp.ne.s32.totalorder %s73, %s76
      %p85 = scmp.eq.s32.totalorder %s16, 3
      %p86 = por %p84, %p85
      %p87 = scmp.ne.s32.totalorder %s76, %s77
      %p88 = scmp.eq.s32.totalorder %s16, 0
      %p89 = por %p87, %p88
      %p90 = scmp.ne.s32.totalorder %s76, %s77
      %p91 = scmp.eq.s32.totalorder %s17, 3
      %p92 = por %p90, %p91
      %p94 = scmp.ne.s32.totalorder %s77, %s93
      %p95 = scmp.eq.s32.totalorder %s17, 0
      %p96 = por %p94, %p95
      %p97 = scmp.le.s32.totalorder 1, %s11
      %p98 = scmp.lt.s32.totalorder %s11, 5
      %p99 = pnand %p97, %p98
      %p100 = pneg %p99
      // Predicated region
      $region9: #{tpu_custom_call.1} parent=5 // pred_check
        _
      $region10: #{tpu_custom_call.1} parent=5 // pred_check_branch
        %102 = sbr.rel (%p99) target = $region12
      $region11: #{tpu_custom_call.1} parent=5 // pred_region
        %s103 = ssub.s32 %s11, 1
      $region12: #{tpu_custom_call.1} parent=5 // pred_fallthru
        _
      %p104 = scmp.lt.s32.totalorder %s11, 4
      // Predicated region
      $region13: #{tpu_custom_call.1} parent=5 // pred_check
        %p105 = pneg %p104
      $region14: #{tpu_custom_call.1} parent=5 // pred_check_branch
        %107 = sbr.rel (%p105) target = $region16
      $region15: #{tpu_custom_call.1} parent=5 // pred_region
        // Predicated region
        $region17: #{tpu_custom_call.1} parent=15 // pred_check
          %p108 = pneg %p31
        $region18: #{tpu_custom_call.1} parent=15 // pred_check_branch
          %110 = sbr.rel (%p108) target = $region20
        $region19: #{tpu_custom_call.1} parent=15 // pred_region
          %p111 = scmp.lt.s32.totalorder %s11, 3
          %s112 = scalar_select %p111, %s11, 3
          %s113 = smul.addr %s112, 48
          %s114 = smul.addr %s113, 8
          %s115 = scalar_lea.vmem %s0, %s114
        $region20: #{tpu_custom_call.1} parent=15 // pred_fallthru
          _
        // Predicated region
        $region21: #{tpu_custom_call.1} parent=15 // pred_check
          %p116 = pneg %p57
        $region22: #{tpu_custom_call.1} parent=15 // pred_check_branch
          %118 = sbr.rel (%p116) target = $region24
        $region23: #{tpu_custom_call.1} parent=15 // pred_region
          %p119 = scmp.lt.s32.totalorder %s11, 3
          %s120 = scalar_select %p119, %s11, 3
          %s121 = smul.addr %s120, 48
          %s122 = smul.addr %s121, 8
          %s123 = scalar_lea.vmem %s1, %s122
        $region24: #{tpu_custom_call.1} parent=15 // pred_fallthru
          _
      $region16: #{tpu_custom_call.1} parent=5 // pred_fallthru
        _
      %p124 = scmp.le.s32.totalorder 1, %s11
      %p125 = scmp.lt.s32.totalorder %s11, 5
      %p126 = pnand %p124, %p125
      %p127 = pneg %p126
      // Predicated region
      $region25: #{tpu_custom_call.1} parent=5 // pred_check
        _
      $region26: #{tpu_custom_call.1} parent=5 // pred_check_branch
        %129 = sbr.rel (%p126) target = $region28
      $region27: #{tpu_custom_call.1} parent=5 // pred_region
        %s130 = ssub.s32 %s11, 1
        %p131 = scmp.lt.s32.totalorder %s16, 3
        %s132 = scalar_select %p131, %s16, 3
        %s133 = smul.addr %s132, 48
        %s134 = smul.addr %s133, 8
        %s135 = scalar_lea.vmem %s0, %s134
        %p136 = pneg %p37
        %p137 = pneg %p34
        %p138 = scmp.lt.s32.totalorder %s16, 3
        %s139 = scalar_select %p138, %s16, 3
        %s140 = smul.addr %s139, 48
        %s141 = smul.addr %s140, 8
        %s142 = scalar_lea.vmem %s1, %s141
        %p143 = pneg %p63
        %p144 = pneg %p60
        %p145 = pneg %p89
        %p146 = pneg %p86
        %s147 = sand.u32 %s76, 1
        %s148 = scalar_lea.sflag [#allocation3], %s147
        %s149 = sand.u32 %s76, 1
        %s150 = smul.addr %s149, 1152
        %s151 = scalar_lea.vmem [#allocation2], %s150
        %p152 = scmp.lt.s32.totalorder %s16, 3
        %s153 = scalar_select %p152, %s16, 3
        %s154 = smul.addr %s153, 48
        %s155 = smul.addr %s154, 8
        %s156 = scalar_lea.vmem %s0, %s155
        %p157 = scmp.lt.s32.totalorder %s16, 3
        %s158 = scalar_select %p157, %s16, 3
        %s159 = smul.addr %s158, 48
        %s160 = smul.addr %s159, 8
        %s161 = scalar_lea.vmem %s1, %s160
        %v162 = vld [vmem:[%s156] sm:$0xff]
        %v163 = vld [vmem:[%s156 + $0x8] sm:$0xff]
        %v164 = vld [vmem:[%s156 + $0x10] sm:$0xff]
        %v165 = vld [vmem:[%s156 + $0x18] sm:$0xff]
        %v166 = vld [vmem:[%s156 + $0x20] sm:$0xff]
        %v167 = vld [vmem:[%s156 + $0x28] sm:$0xff]
        %v168 = vld [vmem:[%s156 + $0x30] sm:$0xff]
        %v169 = vld [vmem:[%s156 + $0x38] sm:$0xff]
        %v170 = vld [vmem:[%s156 + $0x40] sm:$0xff]
        %v171 = vld [vmem:[%s156 + $0x48] sm:$0xff]
        %v172 = vld [vmem:[%s156 + $0x50] sm:$0xff]
        %v173 = vld [vmem:[%s156 + $0x58] sm:$0xff]
        %v174 = vld [vmem:[%s156 + $0x60] sm:$0xff]
        %v175 = vld [vmem:[%s156 + $0x68] sm:$0xff]
        %v176 = vld [vmem:[%s156 + $0x70] sm:$0xff]
        %v177 = vld [vmem:[%s156 + $0x78] sm:$0xff]
        %v178 = vld [vmem:[%s156 + $0x80] sm:$0xff]
        %v179 = vld [vmem:[%s156 + $0x88] sm:$0xff]
        %v180 = vld [vmem:[%s156 + $0x90] sm:$0xff]
        %v181 = vld [vmem:[%s156 + $0x98] sm:$0xff]
        %v182 = vld [vmem:[%s156 + $0xa0] sm:$0xff]
        %v183 = vld [vmem:[%s156 + $0xa8] sm:$0xff]
        %v184 = vld [vmem:[%s156 + $0xb0] sm:$0xff]
        %v185 = vld [vmem:[%s156 + $0xb8] sm:$0xff]
        %v186 = vld [vmem:[%s156 + $0xc0] sm:$0xff]
        %v187 = vld [vmem:[%s156 + $0xc8] sm:$0xff]
        %v188 = vld [vmem:[%s156 + $0xd0] sm:$0xff]
        %v189 = vld [vmem:[%s156 + $0xd8] sm:$0xff]
        %v190 = vld [vmem:[%s156 + $0xe0] sm:$0xff]
        %v191 = vld [vmem:[%s156 + $0xe8] sm:$0xff]
        %v192 = vld [vmem:[%s156 + $0xf0] sm:$0xff]
        %v193 = vld [vmem:[%s156 + $0xf8] sm:$0xff]
        %v194 = vld [vmem:[%s156 + $0x100] sm:$0xff]
        %v195 = vld [vmem:[%s156 + $0x108] sm:$0xff]
        %v196 = vld [vmem:[%s156 + $0x110] sm:$0xff]
        %v197 = vld [vmem:[%s156 + $0x118] sm:$0xff]
        %v198 = vld [vmem:[%s156 + $0x120] sm:$0xff]
        %v199 = vld [vmem:[%s156 + $0x128] sm:$0xff]
        %v200 = vld [vmem:[%s156 + $0x130] sm:$0xff]
        %v201 = vld [vmem:[%s156 + $0x138] sm:$0xff]
        %v202 = vld [vmem:[%s156 + $0x140] sm:$0xff]
        %v203 = vld [vmem:[%s156 + $0x148] sm:$0xff]
        %v204 = vld [vmem:[%s156 + $0x150] sm:$0xff]
        %v205 = vld [vmem:[%s156 + $0x158] sm:$0xff]
        %v206 = vld [vmem:[%s156 + $0x160] sm:$0xff]
        %v207 = vld [vmem:[%s156 + $0x168] sm:$0xff]
        %v208 = vld [vmem:[%s156 + $0x170] sm:$0xff]
        %v209 = vld [vmem:[%s156 + $0x178] sm:$0xff]
        %v210 = vld [vmem:[%s161] sm:$0xff]
        %v211 = vld [vmem:[%s161 + $0x8] sm:$0xff]
        %v212 = vld [vmem:[%s161 + $0x10] sm:$0xff]
        %v213 = vld [vmem:[%s161 + $0x18] sm:$0xff]
        %v214 = vld [vmem:[%s161 + $0x20] sm:$0xff]
        %v215 = vld [vmem:[%s161 + $0x28] sm:$0xff]
        %v216 = vld [vmem:[%s161 + $0x30] sm:$0xff]
        %v217 = vld [vmem:[%s161 + $0x38] sm:$0xff]
        %v218 = vld [vmem:[%s161 + $0x40] sm:$0xff]
        %v219 = vld [vmem:[%s161 + $0x48] sm:$0xff]
        %v220 = vld [vmem:[%s161 + $0x50] sm:$0xff]
        %v221 = vld [vmem:[%s161 + $0x58] sm:$0xff]
        %v222 = vld [vmem:[%s161 + $0x60] sm:$0xff]
        %v223 = vld [vmem:[%s161 + $0x68] sm:$0xff]
        %v224 = vld [vmem:[%s161 + $0x70] sm:$0xff]
        %v225 = vld [vmem:[%s161 + $0x78] sm:$0xff]
        %v226 = vld [vmem:[%s161 + $0x80] sm:$0xff]
        %v227 = vld [vmem:[%s161 + $0x88] sm:$0xff]
        %v228 = vld [vmem:[%s161 + $0x90] sm:$0xff]
        %v229 = vld [vmem:[%s161 + $0x98] sm:$0xff]
        %v230 = vld [vmem:[%s161 + $0xa0] sm:$0xff]
        %v231 = vld [vmem:[%s161 + $0xa8] sm:$0xff]
        %v232 = vld [vmem:[%s161 + $0xb0] sm:$0xff]
        %v233 = vld [vmem:[%s161 + $0xb8] sm:$0xff]
        %v234 = vld [vmem:[%s161 + $0xc0] sm:$0xff]
        %v235 = vld [vmem:[%s161 + $0xc8] sm:$0xff]
        %v236 = vld [vmem:[%s161 + $0xd0] sm:$0xff]
        %v237 = vld [vmem:[%s161 + $0xd8] sm:$0xff]
        %v238 = vld [vmem:[%s161 + $0xe0] sm:$0xff]
        %v239 = vld [vmem:[%s161 + $0xe8] sm:$0xff]
        %v240 = vld [vmem:[%s161 + $0xf0] sm:$0xff]
        %v241 = vld [vmem:[%s161 + $0xf8] sm:$0xff]
        %v242 = vld [vmem:[%s161 + $0x100] sm:$0xff]
        %v243 = vld [vmem:[%s161 + $0x108] sm:$0xff]
        %v244 = vld [vmem:[%s161 + $0x110] sm:$0xff]
        %v245 = vld [vmem:[%s161 + $0x118] sm:$0xff]
        %v246 = vld [vmem:[%s161 + $0x120] sm:$0xff]
        %v247 = vld [vmem:[%s161 + $0x128] sm:$0xff]
        %v248 = vld [vmem:[%s161 + $0x130] sm:$0xff]
        %v249 = vld [vmem:[%s161 + $0x138] sm:$0xff]
        %v250 = vld [vmem:[%s161 + $0x140] sm:$0xff]
        %v251 = vld [vmem:[%s161 + $0x148] sm:$0xff]
        %v252 = vld [vmem:[%s161 + $0x150] sm:$0xff]
        %v253 = vld [vmem:[%s161 + $0x158] sm:$0xff]
        %v254 = vld [vmem:[%s161 + $0x160] sm:$0xff]
        %v255 = vld [vmem:[%s161 + $0x168] sm:$0xff]
        %v256 = vld [vmem:[%s161 + $0x170] sm:$0xff]
        %v257 = vld [vmem:[%s161 + $0x178] sm:$0xff]
        %vm258 = vcmask 523264
        %v260 = vsel %vm258, %v162, 0
        %v263 = vsel %vm258, %v163, 0
        %v266 = vsel %vm258, %v164, 0
        %v269 = vsel %vm258, %v165, 0
        %v272 = vsel %vm258, %v166, 0
        %v275 = vsel %vm258, %v167, 0
        %v278 = vsel %vm258, %v168, 0
        %v281 = vsel %vm258, %v169, 0
        %v284 = vsel %vm258, %v170, 0
        %v287 = vsel %vm258, %v171, 0
        %v290 = vsel %vm258, %v172, 0
        %v293 = vsel %vm258, %v173, 0
        %v296 = vsel %vm258, %v174, 0
        %v299 = vsel %vm258, %v175, 0
        %v302 = vsel %vm258, %v176, 0
        %v305 = vsel %vm258, %v177, 0
        %v308 = vsel %vm258, %v178, 0
        %v311 = vsel %vm258, %v179, 0
        %v314 = vsel %vm258, %v180, 0
        %v317 = vsel %vm258, %v181, 0
        %v320 = vsel %vm258, %v182, 0
        %v323 = vsel %vm258, %v183, 0
        %v326 = vsel %vm258, %v184, 0
        %v329 = vsel %vm258, %v185, 0
        %v332 = vsel %vm258, %v186, 0
        %v335 = vsel %vm258, %v187, 0
        %v338 = vsel %vm258, %v188, 0
        %v341 = vsel %vm258, %v189, 0
        %v344 = vsel %vm258, %v190, 0
        %v347 = vsel %vm258, %v191, 0
        %v350 = vsel %vm258, %v192, 0
        %v353 = vsel %vm258, %v193, 0
        %v356 = vsel %vm258, %v194, 0
        %v359 = vsel %vm258, %v195, 0
        %v362 = vsel %vm258, %v196, 0
        %v365 = vsel %vm258, %v197, 0
        %v368 = vsel %vm258, %v198, 0
        %v371 = vsel %vm258, %v199, 0
        %v374 = vsel %vm258, %v200, 0
        %v377 = vsel %vm258, %v201, 0
        %v380 = vsel %vm258, %v202, 0
        %v383 = vsel %vm258, %v203, 0
        %v386 = vsel %vm258, %v204, 0
        %v389 = vsel %vm258, %v205, 0
        %v392 = vsel %vm258, %v206, 0
        %v395 = vsel %vm258, %v207, 0
        %v398 = vsel %vm258, %v208, 0
        %v401 = vsel %vm258, %v209, 0
        %v404 = vsel %vm258, %v210, 0
        %v407 = vsel %vm258, %v211, 0
        %v410 = vsel %vm258, %v212, 0
        %v413 = vsel %vm258, %v213, 0
        %v416 = vsel %vm258, %v214, 0
        %v419 = vsel %vm258, %v215, 0
        %v422 = vsel %vm258, %v216, 0
        %v425 = vsel %vm258, %v217, 0
        %v428 = vsel %vm258, %v218, 0
        %v431 = vsel %vm258, %v219, 0
        %v434 = vsel %vm258, %v220, 0
        %v437 = vsel %vm258, %v221, 0
        %v440 = vsel %vm258, %v222, 0
        %v443 = vsel %vm258, %v223, 0
        %v446 = vsel %vm258, %v224, 0
        %v449 = vsel %vm258, %v225, 0
        %v452 = vsel %vm258, %v226, 0
        %v455 = vsel %vm258, %v227, 0
        %v458 = vsel %vm258, %v228, 0
        %v461 = vsel %vm258, %v229, 0
        %v464 = vsel %vm258, %v230, 0
        %v467 = vsel %vm258, %v231, 0
        %v470 = vsel %vm258, %v232, 0
        %v473 = vsel %vm258, %v233, 0
        %v476 = vsel %vm258, %v234, 0
        %v479 = vsel %vm258, %v235, 0
        %v482 = vsel %vm258, %v236, 0
        %v485 = vsel %vm258, %v237, 0
        %v488 = vsel %vm258, %v238, 0
        %v491 = vsel %vm258, %v239, 0
        %v494 = vsel %vm258, %v240, 0
        %v497 = vsel %vm258, %v241, 0
        %v500 = vsel %vm258, %v242, 0
        %v503 = vsel %vm258, %v243, 0
        %v506 = vsel %vm258, %v244, 0
        %v509 = vsel %vm258, %v245, 0
        %v512 = vsel %vm258, %v246, 0
        %v515 = vsel %vm258, %v247, 0
        %v518 = vsel %vm258, %v248, 0
        %v521 = vsel %vm258, %v249, 0
        %v524 = vsel %vm258, %v250, 0
        %v527 = vsel %vm258, %v251, 0
        %v530 = vsel %vm258, %v252, 0
        %v533 = vsel %vm258, %v253, 0
        %v536 = vsel %vm258, %v254, 0
        %v539 = vsel %vm258, %v255, 0
        %v542 = vsel %vm258, %v256, 0
        %v545 = vsel %vm258, %v257, 0
        %547 = vmatprep.subr.mxu0 0.0
        %548 = vmatpush1.xpose.msra.mxu0 %v404
        %549 = vmatprep.subr.mxu0 0.0
        %550 = vmatpush1.xpose.msra.mxu0 %v407
        %551 = vmatprep.subr.mxu0 0.0
        %552 = vmatpush1.xpose.msra.mxu0 %v410
        %553 = vmatprep.subr.mxu0 0.0
        %554 = vmatpush1.xpose.msra.mxu0 %v413
        %555 = vmatprep.subr.mxu0 0.0
        %556 = vmatpush1.xpose.msra.mxu0 %v416
        %557 = vmatprep.subr.mxu0 0.0
        %558 = vmatpush1.xpose.msra.mxu0 %v419
        %559 = vmatprep.subr.mxu0 0.0
        %560 = vmatpush1.xpose.msra.mxu0 %v422
        %561 = vmatprep.subr.mxu0 0.0
        %562 = vmatpush1.xpose.msra.mxu0 %v425
        %563 = vmatprep.subr.mxu0 0.0
        %564 = vmatpush1.xpose.msra.mxu0 %v428
        %565 = vmatprep.subr.mxu0 0.0
        %566 = vmatpush1.xpose.msra.mxu0 %v431
        %567 = vmatprep.subr.mxu0 0.0
        %568 = vmatpush1.xpose.msra.mxu0 %v434
        %569 = vmatprep.subr.mxu0 0.0
        %570 = vmatpush1.xpose.msra.mxu0 %v437
        %571 = vmatprep.subr.mxu0 0.0
        %572 = vmatpush1.xpose.msra.mxu0 %v440
        %573 = vmatprep.subr.mxu0 0.0
        %574 = vmatpush1.xpose.msra.mxu0 %v443
        %575 = vmatprep.subr.mxu0 0.0
        %576 = vmatpush1.xpose.msra.mxu0 %v446
        %577 = vmatprep.subr.mxu0 0.0
        %578 = vmatpush1.xpose.msra.mxu0 %v449
        %579 = vmatprep.subr.mxu0 0.0
        %580 = vmatpush1.xpose.msra.mxu0 %v452
        %581 = vmatprep.subr.mxu0 0.0
        %582 = vmatpush1.xpose.msra.mxu0 %v455
        %583 = vmatprep.subr.mxu0 0.0
        %584 = vmatpush1.xpose.msra.mxu0 %v458
        %585 = vmatprep.subr.mxu0 0.0
        %586 = vmatpush1.xpose.msra.mxu0 %v461
        %587 = vmatprep.subr.mxu0 0.0
        %588 = vmatpush1.xpose.msra.mxu0 %v464
        %589 = vmatprep.subr.mxu0 0.0
        %590 = vmatpush1.xpose.msra.mxu0 %v467
        %591 = vmatprep.subr.mxu0 0.0
        %592 = vmatpush1.xpose.msra.mxu0 %v470
        %593 = vmatprep.subr.mxu0 0.0
        %594 = vmatpush1.xpose.msra.mxu0 %v473
        %595 = vmatprep.subr.mxu0 0.0
        %596 = vmatpush1.xpose.msra.mxu0 %v476
        %597 = vmatprep.subr.mxu0 0.0
        %598 = vmatpush1.xpose.msra.mxu0 %v479
        %599 = vmatprep.subr.mxu0 0.0
        %600 = vmatpush1.xpose.msra.mxu0 %v482
        %601 = vmatprep.subr.mxu0 0.0
        %602 = vmatpush1.xpose.msra.mxu0 %v485
        %603 = vmatprep.subr.mxu0 0.0
        %604 = vmatpush1.xpose.msra.mxu0 %v488
        %605 = vmatprep.subr.mxu0 0.0
        %606 = vmatpush1.xpose.msra.mxu0 %v491
        %607 = vmatprep.subr.mxu0 0.0
        %608 = vmatpush1.xpose.msra.mxu0 %v494
        %609 = vmatprep.subr.mxu0 0.0
        %610 = vmatpush1.xpose.msra.mxu0 %v497
        %611 = vmatprep.mubr.f32.mxu0 0.0
        %612 = vmatmul.mubr.f32.gmra.mrb[0].mxu0 %v260
        %v613 = vpop.f32.mrb[0].mxu0
        %v614 = vadd.f32 0.0, %v613
        %v615 = vpop.f32.mrb[0].mxu0
        %v616 = vadd.f32 0.0, %v615
        %617 = vmatprep.mubr.f32.mxu0 0.0
        %618 = vmatmul.mubr.f32.gmra.mrb[0].mxu0 %v263
        %v619 = vpop.f32.mrb[0].mxu0
        %v620 = vadd.f32 0.0, %v619
        %v621 = vpop.f32.mrb[0].mxu0
        %v622 = vadd.f32 0.0, %v621
        %623 = vmatprep.mubr.f32.mxu0 0.0
        %624 = vmatmul.mubr.f32.gmra.mrb[0].mxu0 %v266
        %v625 = vpop.f32.mrb[0].mxu0
        %v626 = vadd.f32 0.0, %v625
        %v627 = vpop.f32.mrb[0].mxu0
        %v628 = vadd.f32 0.0, %v627
        %629 = vmatprep.mubr.f32.mxu0 0.0
        %630 = vmatmul.mubr.f32.gmra.mrb[0].mxu0 %v269
        %v631 = vpop.f32.mrb[0].mxu0
        %v632 = vadd.f32 0.0, %v631
        %v633 = vpop.f32.mrb[0].mxu0
        %v634 = vadd.f32 0.0, %v633
        %635 = vmatprep.mubr.f32.mxu0 0.0
        %636 = vmatmul.mubr.f32.gmra.mrb[0].mxu0 %v272
        %v637 = vpop.f32.mrb[0].mxu0
        %v638 = vadd.f32 0.0, %v637
        %v639 = vpop.f32.mrb[0].mxu0
        %v640 = vadd.f32 0.0, %v639
        %641 = vmatprep.mubr.f32.mxu0 0.0
        %642 = vmatmul.mubr.f32.gmra.mrb[0].mxu0 %v275
        %v643 = vpop.f32.mrb[0].mxu0
        %v644 = vadd.f32 0.0, %v643
        %v645 = vpop.f32.mrb[0].mxu0
        %v646 = vadd.f32 0.0, %v645
        %647 = vmatprep.mubr.f32.mxu0 0.0
        %648 = vmatmul.mubr.f32.gmra.mrb[0].mxu0 %v278
        %v649 = vpop.f32.mrb[0].mxu0
        %v650 = vadd.f32 0.0, %v649
        %v651 = vpop.f32.mrb[0].mxu0
        %v652 = vadd.f32 0.0, %v651
        %653 = vmatprep.mubr.f32.mxu0 0.0
        %654 = vmatmul.mubr.f32.gmra.mrb[0].mxu0 %v281
        %v655 = vpop.f32.mrb[0].mxu0
        %v656 = vadd.f32 0.0, %v655
        %v657 = vpop.f32.mrb[0].mxu0
        %v658 = vadd.f32 0.0, %v657
        %659 = vmatprep.mubr.f32.mxu0 0.0
        %660 = vmatmul.mubr.f32.gmra.mrb[0].mxu0 %v284
        %v661 = vpop.f32.mrb[0].mxu0
        %v662 = vadd.f32 0.0, %v661
        %v663 = vpop.f32.mrb[0].mxu0
        %v664 = vadd.f32 0.0, %v663
        %665 = vmatprep.mubr.f32.mxu0 0.0
        %666 = vmatmul.mubr.f32.gmra.mrb[0].mxu0 %v287
        %v667 = vpop.f32.mrb[0].mxu0
        %v668 = vadd.f32 0.0, %v667
        %v669 = vpop.f32.mrb[0].mxu0
        %v670 = vadd.f32 0.0, %v669
        %671 = vmatprep.mubr.f32.mxu0 0.0
        %672 = vmatmul.mubr.f32.gmra.mrb[0].mxu0 %v290
        %v673 = vpop.f32.mrb[0].mxu0
        %v674 = vadd.f32 0.0, %v673
        %v675 = vpop.f32.mrb[0].mxu0
        %v676 = vadd.f32 0.0, %v675
        %677 = vmatprep.mubr.f32.mxu0 0.0
        %678 = vmatmul.mubr.f32.gmra.mrb[0].mxu0 %v293
        %v679 = vpop.f32.mrb[0].mxu0
        %v680 = vadd.f32 0.0, %v679
        %v681 = vpop.f32.mrb[0].mxu0
        %v682 = vadd.f32 0.0, %v681
        %683 = vmatprep.mubr.f32.mxu0 0.0
        %684 = vmatmul.mubr.f32.gmra.mrb[0].mxu0 %v296
        %v685 = vpop.f32.mrb[0].mxu0
        %v686 = vadd.f32 0.0, %v685
        %v687 = vpop.f32.mrb[0].mxu0
        %v688 = vadd.f32 0.0, %v687
        %689 = vmatprep.mubr.f32.mxu0 0.0
        %690 = vmatmul.mubr.f32.gmra.mrb[0].mxu0 %v299
        %v691 = vpop.f32.mrb[0].mxu0
        %v692 = vadd.f32 0.0, %v691
        %v693 = vpop.f32.mrb[0].mxu0
        %v694 = vadd.f32 0.0, %v693
        %695 = vmatprep.mubr.f32.mxu0 0.0
        %696 = vmatmul.mubr.f32.gmra.mrb[0].mxu0 %v302
        %v697 = vpop.f32.mrb[0].mxu0
        %v698 = vadd.f32 0.0, %v697
        %v699 = vpop.f32.mrb[0].mxu0
        %v700 = vadd.f32 0.0, %v699
        %701 = vmatprep.mubr.f32.mxu0 0.0
        %702 = vmatmul.mubr.f32.gmra.mrb[0].mxu0 %v305
        %v703 = vpop.f32.mrb[0].mxu0
        %v704 = vadd.f32 0.0, %v703
        %v705 = vpop.f32.mrb[0].mxu0
        %v706 = vadd.f32 0.0, %v705
        %707 = vmatprep.mubr.f32.mxu0 0.0
        %708 = vmatmul.mubr.f32.gmra.mrb[0].mxu0 %v308
        %v709 = vpop.f32.mrb[0].mxu0
        %v710 = vadd.f32 0.0, %v709
        %v711 = vpop.f32.mrb[0].mxu0
        %v712 = vadd.f32 0.0, %v711
        %713 = vmatprep.mubr.f32.mxu0 0.0
        %714 = vmatmul.mubr.f32.gmra.mrb[0].mxu0 %v311
        %v715 = vpop.f32.mrb[0].mxu0
        %v716 = vadd.f32 0.0, %v715
        %v717 = vpop.f32.mrb[0].mxu0
        %v718 = vadd.f32 0.0, %v717
        %719 = vmatprep.mubr.f32.mxu0 0.0
        %720 = vmatmul.mubr.f32.gmra.mrb[0].mxu0 %v314
        %v721 = vpop.f32.mrb[0].mxu0
        %v722 = vadd.f32 0.0, %v721
        %v723 = vpop.f32.mrb[0].mxu0
        %v724 = vadd.f32 0.0, %v723
        %725 = vmatprep.mubr.f32.mxu0 0.0
        %726 = vmatmul.mubr.f32.gmra.mrb[0].mxu0 %v317
        %v727 = vpop.f32.mrb[0].mxu0
        %v728 = vadd.f32 0.0, %v727
        %v729 = vpop.f32.mrb[0].mxu0
        %v730 = vadd.f32 0.0, %v729
        %731 = vmatprep.mubr.f32.mxu0 0.0
        %732 = vmatmul.mubr.f32.gmra.mrb[0].mxu0 %v320
        %v733 = vpop.f32.mrb[0].mxu0
        %v734 = vadd.f32 0.0, %v733
        %v735 = vpop.f32.mrb[0].mxu0
        %v736 = vadd.f32 0.0, %v735
        %737 = vmatprep.mubr.f32.mxu0 0.0
        %738 = vmatmul.mubr.f32.gmra.mrb[0].mxu0 %v323
        %v739 = vpop.f32.mrb[0].mxu0
        %v740 = vadd.f32 0.0, %v739
        %v741 = vpop.f32.mrb[0].mxu0
        %v742 = vadd.f32 0.0, %v741
        %743 = vmatprep.mubr.f32.mxu0 0.0
        %744 = vmatmul.mubr.f32.gmra.mrb[0].mxu0 %v326
        %v745 = vpop.f32.mrb[0].mxu0
        %v746 = vadd.f32 0.0, %v745
        %v747 = vpop.f32.mrb[0].mxu0
        %v748 = vadd.f32 0.0, %v747
        %749 = vmatprep.mubr.f32.mxu0 0.0
        %750 = vmatmul.mubr.f32.gmra.mrb[0].mxu0 %v329
        %v751 = vpop.f32.mrb[0].mxu0
        %v752 = vadd.f32 0.0, %v751
        %v753 = vpop.f32.mrb[0].mxu0
        %v754 = vadd.f32 0.0, %v753
        %755 = vmatprep.mubr.f32.mxu0 0.0
        %756 = vmatmul.mubr.f32.gmra.mrb[0].mxu0 %v332
        %v757 = vpop.f32.mrb[0].mxu0
        %v758 = vadd.f32 0.0, %v757
        %v759 = vpop.f32.mrb[0].mxu0
        %v760 = vadd.f32 0.0, %v759
        %761 = vmatprep.mubr.f32.mxu0 0.0
        %762 = vmatmul.mubr.f32.gmra.mrb[0].mxu0 %v335
        %v763 = vpop.f32.mrb[0].mxu0
        %v764 = vadd.f32 0.0, %v763
        %v765 = vpop.f32.mrb[0].mxu0
        %v766 = vadd.f32 0.0, %v765
        %767 = vmatprep.mubr.f32.mxu0 0.0
        %768 = vmatmul.mubr.f32.gmra.mrb[0].mxu0 %v338
        %v769 = vpop.f32.mrb[0].mxu0
        %v770 = vadd.f32 0.0, %v769
        %v771 = vpop.f32.mrb[0].mxu0
        %v772 = vadd.f32 0.0, %v771
        %773 = vmatprep.mubr.f32.mxu0 0.0
        %774 = vmatmul.mubr.f32.gmra.mrb[0].mxu0 %v341
        %v775 = vpop.f32.mrb[0].mxu0
        %v776 = vadd.f32 0.0, %v775
        %v777 = vpop.f32.mrb[0].mxu0
        %v778 = vadd.f32 0.0, %v777
        %779 = vmatprep.mubr.f32.mxu0 0.0
        %780 = vmatmul.mubr.f32.gmra.mrb[0].mxu0 %v344
        %v781 = vpop.f32.mrb[0].mxu0
        %v782 = vadd.f32 0.0, %v781
        %v783 = vpop.f32.mrb[0].mxu0
        %v784 = vadd.f32 0.0, %v783
        %785 = vmatprep.mubr.f32.mxu0 0.0
        %786 = vmatmul.mubr.f32.gmra.mrb[0].mxu0 %v347
        %v787 = vpop.f32.mrb[0].mxu0
        %v788 = vadd.f32 0.0, %v787
        %v789 = vpop.f32.mrb[0].mxu0
        %v790 = vadd.f32 0.0, %v789
        %791 = vmatprep.mubr.f32.mxu0 0.0
        %792 = vmatmul.mubr.f32.gmra.mrb[0].mxu0 %v350
        %v793 = vpop.f32.mrb[0].mxu0
        %v794 = vadd.f32 0.0, %v793
        %v795 = vpop.f32.mrb[0].mxu0
        %v796 = vadd.f32 0.0, %v795
        %797 = vmatprep.mubr.f32.mxu0 0.0
        %798 = vmatmul.mubr.f32.gmra.mrb[0].mxu0 %v353
        %v799 = vpop.f32.mrb[0].mxu0
        %v800 = vadd.f32 0.0, %v799
        %v801 = vpop.f32.mrb[0].mxu0
        %v802 = vadd.f32 0.0, %v801
        %803 = vmatprep.mubr.f32.mxu0 0.0
        %804 = vmatmul.mubr.f32.gmra.mrb[0].mxu0 %v356
        %v805 = vpop.f32.mrb[0].mxu0
        %v806 = vadd.f32 0.0, %v805
        %v807 = vpop.f32.mrb[0].mxu0
        %v808 = vadd.f32 0.0, %v807
        %809 = vmatprep.mubr.f32.mxu0 0.0
        %810 = vmatmul.mubr.f32.gmra.mrb[0].mxu0 %v359
        %v811 = vpop.f32.mrb[0].mxu0
        %v812 = vadd.f32 0.0, %v811
        %v813 = vpop.f32.mrb[0].mxu0
        %v814 = vadd.f32 0.0, %v813
        %815 = vmatprep.mubr.f32.mxu0 0.0
        %816 = vmatmul.mubr.f32.gmra.mrb[0].mxu0 %v362
        %v817 = vpop.f32.mrb[0].mxu0
        %v818 = vadd.f32 0.0, %v817
        %v819 = vpop.f32.mrb[0].mxu0
        %v820 = vadd.f32 0.0, %v819
        %821 = vmatprep.mubr.f32.mxu0 0.0
        %822 = vmatmul.mubr.f32.gmra.mrb[0].mxu0 %v365
        %v823 = vpop.f32.mrb[0].mxu0
        %v824 = vadd.f32 0.0, %v823
        %v825 = vpop.f32.mrb[0].mxu0
        %v826 = vadd.f32 0.0, %v825
        %827 = vmatprep.mubr.f32.mxu0 0.0
        %828 = vmatmul.mubr.f32.gmra.mrb[0].mxu0 %v368
        %v829 = vpop.f32.mrb[0].mxu0
        %v830 = vadd.f32 0.0, %v829
        %v831 = vpop.f32.mrb[0].mxu0
        %v832 = vadd.f32 0.0, %v831
        %833 = vmatprep.mubr.f32.mxu0 0.0
        %834 = vmatmul.mubr.f32.gmra.mrb[0].mxu0 %v371
        %v835 = vpop.f32.mrb[0].mxu0
        %v836 = vadd.f32 0.0, %v835
        %v837 = vpop.f32.mrb[0].mxu0
        %v838 = vadd.f32 0.0, %v837
        %839 = vmatprep.mubr.f32.mxu0 0.0
        %840 = vmatmul.mubr.f32.gmra.mrb[0].mxu0 %v374
        %v841 = vpop.f32.mrb[0].mxu0
        %v842 = vadd.f32 0.0, %v841
        %v843 = vpop.f32.mrb[0].mxu0
        %v844 = vadd.f32 0.0, %v843
        %845 = vmatprep.mubr.f32.mxu0 0.0
        %846 = vmatmul.mubr.f32.gmra.mrb[0].mxu0 %v377
        %v847 = vpop.f32.mrb[0].mxu0
        %v848 = vadd.f32 0.0, %v847
        %v849 = vpop.f32.mrb[0].mxu0
        %v850 = vadd.f32 0.0, %v849
        %851 = vmatprep.mubr.f32.mxu0 0.0
        %852 = vmatmul.mubr.f32.gmra.mrb[0].mxu0 %v380
        %v853 = vpop.f32.mrb[0].mxu0
        %v854 = vadd.f32 0.0, %v853
        %v855 = vpop.f32.mrb[0].mxu0
        %v856 = vadd.f32 0.0, %v855
        %857 = vmatprep.mubr.f32.mxu0 0.0
        %858 = vmatmul.mubr.f32.gmra.mrb[0].mxu0 %v383
        %v859 = vpop.f32.mrb[0].mxu0
        %v860 = vadd.f32 0.0, %v859
        %v861 = vpop.f32.mrb[0].mxu0
        %v862 = vadd.f32 0.0, %v861
        %863 = vmatprep.mubr.f32.mxu0 0.0
        %864 = vmatmul.mubr.f32.gmra.mrb[0].mxu0 %v386
        %v865 = vpop.f32.mrb[0].mxu0
        %v866 = vadd.f32 0.0, %v865
        %v867 = vpop.f32.mrb[0].mxu0
        %v868 = vadd.f32 0.0, %v867
        %869 = vmatprep.mubr.f32.mxu0 0.0
        %870 = vmatmul.mubr.f32.gmra.mrb[0].mxu0 %v389
        %v871 = vpop.f32.mrb[0].mxu0
        %v872 = vadd.f32 0.0, %v871
        %v873 = vpop.f32.mrb[0].mxu0
        %v874 = vadd.f32 0.0, %v873
        %875 = vmatprep.mubr.f32.mxu0 0.0
        %876 = vmatmul.mubr.f32.gmra.mrb[0].mxu0 %v392
        %v877 = vpop.f32.mrb[0].mxu0
        %v878 = vadd.f32 0.0, %v877
        %v879 = vpop.f32.mrb[0].mxu0
        %v880 = vadd.f32 0.0, %v879
        %881 = vmatprep.mubr.f32.mxu0 0.0
        %882 = vmatmul.mubr.f32.gmra.mrb[0].mxu0 %v395
        %v883 = vpop.f32.mrb[0].mxu0
        %v884 = vadd.f32 0.0, %v883
        %v885 = vpop.f32.mrb[0].mxu0
        %v886 = vadd.f32 0.0, %v885
        %887 = vmatprep.mubr.f32.mxu0 0.0
        %888 = vmatmul.mubr.f32.gmra.mrb[0].mxu0 %v398
        %v889 = vpop.f32.mrb[0].mxu0
        %v890 = vadd.f32 0.0, %v889
        %v891 = vpop.f32.mrb[0].mxu0
        %v892 = vadd.f32 0.0, %v891
        %893 = vmatprep.mubr.f32.mxu0 0.0
        %894 = vmatmul.mubr.f32.gmra.mrb[0].mxu0 %v401
        %v895 = vpop.f32.mrb[0].mxu0
        %v896 = vadd.f32 0.0, %v895
        %v897 = vpop.f32.mrb[0].mxu0
        %v898 = vadd.f32 0.0, %v897
        %899 = vdwg.mxu0
        %900 = vmatprep.subr.mxu0 0.0
        %901 = vmatpush1.xpose.msra.mxu0 %v500
        %902 = vmatprep.subr.mxu0 0.0
        %903 = vmatpush1.xpose.msra.mxu0 %v503
        %904 = vmatprep.subr.mxu0 0.0
        %905 = vmatpush1.xpose.msra.mxu0 %v506
        %906 = vmatprep.subr.mxu0 0.0
        %907 = vmatpush1.xpose.msra.mxu0 %v509
        %908 = vmatprep.subr.mxu0 0.0
        %909 = vmatpush1.xpose.msra.mxu0 %v512
        %910 = vmatprep.subr.mxu0 0.0
        %911 = vmatpush1.xpose.msra.mxu0 %v515
        %912 = vmatprep.subr.mxu0 0.0
        %913 = vmatpush1.xpose.msra.mxu0 %v518
        %914 = vmatprep.subr.mxu0 0.0
        %915 = vmatpush1.xpose.msra.mxu0 %v521
        %916 = vmatprep.subr.mxu0 0.0
        %917 = vmatpush1.xpose.msra.mxu0 %v524
        %918 = vmatprep.subr.mxu0 0.0
        %919 = vmatpush1.xpose.msra.mxu0 %v527
        %920 = vmatprep.subr.mxu0 0.0
        %921 = vmatpush1.xpose.msra.mxu0 %v530
        %922 = vmatprep.subr.mxu0 0.0
        %923 = vmatpush1.xpose.msra.mxu0 %v533
        %924 = vmatprep.subr.mxu0 0.0
        %925 = vmatpush1.xpose.msra.mxu0 %v536
        %926 = vmatprep.subr.mxu0 0.0
        %927 = vmatpush1.xpose.msra.mxu0 %v539
        %928 = vmatprep.subr.mxu0 0.0
        %929 = vmatpush1.xpose.msra.mxu0 %v542
        %930 = vmatprep.subr.mxu0 0.0
        %931 = vmatpush1.xpose.msra.mxu0 %v545
        %932 = vmatprep.subr.mxu0 0.0
        %933 = vmatpush1.xpose.msra.mxu0 0.0
        %934 = vmatprep.subr.mxu0 0.0
        %935 = vmatpush1.xpose.msra.mxu0 0.0
        %936 = vmatprep.subr.mxu0 0.0
        %937 = vmatpush1.xpose.msra.mxu0 0.0
        %938 = vmatprep.subr.mxu0 0.0
        %939 = vmatpush1.xpose.msra.mxu0 0.0
        %940 = vmatprep.subr.mxu0 0.0
        %941 = vmatpush1.xpose.msra.mxu0 0.0
        %942 = vmatprep.subr.mxu0 0.0
        %943 = vmatpush1.xpose.msra.mxu0 0.0
        %944 = vmatprep.subr.mxu0 0.0
        %945 = vmatpush1.xpose.msra.mxu0 0.0
        %946 = vmatprep.subr.mxu0 0.0
        %947 = vmatpush1.xpose.msra.mxu0 0.0
        %948 = vmatprep.subr.mxu0 0.0
        %949 = vmatpush1.xpose.msra.mxu0 0.0
        %950 = vmatprep.subr.mxu0 0.0
        %951 = vmatpush1.xpose.msra.mxu0 0.0
        %952 = vmatprep.subr.mxu0 0.0
        %953 = vmatpush1.xpose.msra.mxu0 0.0
        %954 = vmatprep.subr.mxu0 0.0
        %955 = vmatpush1.xpose.msra.mxu0 0.0
        %956 = vmatprep.subr.mxu0 0.0
        %957 = vmatpush1.xpose.msra.mxu0 0.0
        %958 = vmatprep.subr.mxu0 0.0
        %959 = vmatpush1.xpose.msra.mxu0 0.0
        %960 = vmatprep.subr.mxu0 0.0
        %961 = vmatpush1.xpose.msra.mxu0 0.0
        %962 = vmatprep.subr.mxu0 0.0
        %963 = vmatpush1.xpose.msra.mxu0 0.0
        %964 = vmatprep.mubr.f32.mxu0 0.0
        %965 = vmatmul.mubr.f32.gmra.mrb[0].mxu0 %v260
        %v966 = vpop.f32.mrb[0].mxu0
        %v967 = vadd.f32 0.0, %v966
        %v968 = vpop.f32.mrb[0].mxu0
        %969 = vmatprep.mubr.f32.mxu0 0.0
        %970 = vmatmul.mubr.f32.gmra.mrb[0].mxu0 %v263
        %v971 = vpop.f32.mrb[0].mxu0
        %v972 = vadd.f32 0.0, %v971
        %v973 = vpop.f32.mrb[0].mxu0
        %974 = vmatprep.mubr.f32.mxu0 0.0
        %975 = vmatmul.mubr.f32.gmra.mrb[0].mxu0 %v266
        %v976 = vpop.f32.mrb[0].mxu0
        %v977 = vadd.f32 0.0, %v976
        %v978 = vpop.f32.mrb[0].mxu0
        %979 = vmatprep.mubr.f32.mxu0 0.0
        %980 = vmatmul.mubr.f32.gmra.mrb[0].mxu0 %v269
        %v981 = vpop.f32.mrb[0].mxu0
        %v982 = vadd.f32 0.0, %v981
        %v983 = vpop.f32.mrb[0].mxu0
        %984 = vmatprep.mubr.f32.mxu0 0.0
        %985 = vmatmul.mubr.f32.gmra.mrb[0].mxu0 %v272
        %v986 = vpop.f32.mrb[0].mxu0
        %v987 = vadd.f32 0.0, %v986
        %v988 = vpop.f32.mrb[0].mxu0
        %989 = vmatprep.mubr.f32.mxu0 0.0
        %990 = vmatmul.mubr.f32.gmra.mrb[0].mxu0 %v275
        %v991 = vpop.f32.mrb[0].mxu0
        %v992 = vadd.f32 0.0, %v991
        %v993 = vpop.f32.mrb[0].mxu0
        %994 = vmatprep.mubr.f32.mxu0 0.0
        %995 = vmatmul.mubr.f32.gmra.mrb[0].mxu0 %v278
        %v996 = vpop.f32.mrb[0].mxu0
        %v997 = vadd.f32 0.0, %v996
        %v998 = vpop.f32.mrb[0].mxu0
        %999 = vmatprep.mubr.f32.mxu0 0.0
        %1000 = vmatmul.mubr.f32.gmra.mrb[0].mxu0 %v281
        %v1001 = vpop.f32.mrb[0].mxu0
        %v1002 = vadd.f32 0.0, %v1001
        %v1003 = vpop.f32.mrb[0].mxu0
        %1004 = vmatprep.mubr.f32.mxu0 0.0
        %1005 = vmatmul.mubr.f32.gmra.mrb[0].mxu0 %v284
        %v1006 = vpop.f32.mrb[0].mxu0
        %v1007 = vadd.f32 0.0, %v1006
        %v1008 = vpop.f32.mrb[0].mxu0
        %1009 = vmatprep.mubr.f32.mxu0 0.0
        %1010 = vmatmul.mubr.f32.gmra.mrb[0].mxu0 %v287
        %v1011 = vpop.f32.mrb[0].mxu0
        %v1012 = vadd.f32 0.0, %v1011
        %v1013 = vpop.f32.mrb[0].mxu0
        %1014 = vmatprep.mubr.f32.mxu0 0.0
        %1015 = vmatmul.mubr.f32.gmra.mrb[0].mxu0 %v290
        %v1016 = vpop.f32.mrb[0].mxu0
        %v1017 = vadd.f32 0.0, %v1016
        %v1018 = vpop.f32.mrb[0].mxu0
        %1019 = vmatprep.mubr.f32.mxu0 0.0
        %1020 = vmatmul.mubr.f32.gmra.mrb[0].mxu0 %v293
        %v1021 = vpop.f32.mrb[0].mxu0
        %v1022 = vadd.f32 0.0, %v1021
        %v1023 = vpop.f32.mrb[0].mxu0
        %1024 = vmatprep.mubr.f32.mxu0 0.0
        %1025 = vmatmul.mubr.f32.gmra.mrb[0].mxu0 %v296
        %v1026 = vpop.f32.mrb[0].mxu0
        %v1027 = vadd.f32 0.0, %v1026
        %v1028 = vpop.f32.mrb[0].mxu0
        %1029 = vmatprep.mubr.f32.mxu0 0.0
        %1030 = vmatmul.mubr.f32.gmra.mrb[0].mxu0 %v299
        %v1031 = vpop.f32.mrb[0].mxu0
        %v1032 = vadd.f32 0.0, %v1031
        %v1033 = vpop.f32.mrb[0].mxu0
        %1034 = vmatprep.mubr.f32.mxu0 0.0
        %1035 = vmatmul.mubr.f32.gmra.mrb[0].mxu0 %v302
        %v1036 = vpop.f32.mrb[0].mxu0
        %v1037 = vadd.f32 0.0, %v1036
        %v1038 = vpop.f32.mrb[0].mxu0
        %1039 = vmatprep.mubr.f32.mxu0 0.0
        %1040 = vmatmul.mubr.f32.gmra.mrb[0].mxu0 %v305
        %v1041 = vpop.f32.mrb[0].mxu0
        %v1042 = vadd.f32 0.0, %v1041
        %v1043 = vpop.f32.mrb[0].mxu0
        %1044 = vmatprep.mubr.f32.mxu0 0.0
        %1045 = vmatmul.mubr.f32.gmra.mrb[0].mxu0 %v308
        %v1046 = vpop.f32.mrb[0].mxu0
        %v1047 = vadd.f32 0.0, %v1046
        %v1048 = vpop.f32.mrb[0].mxu0
        %1049 = vmatprep.mubr.f32.mxu0 0.0
        %1050 = vmatmul.mubr.f32.gmra.mrb[0].mxu0 %v311
        %v1051 = vpop.f32.mrb[0].mxu0
        %v1052 = vadd.f32 0.0, %v1051
        %v1053 = vpop.f32.mrb[0].mxu0
        %1054 = vmatprep.mubr.f32.mxu0 0.0
        %1055 = vmatmul.mubr.f32.gmra.mrb[0].mxu0 %v314
        %v1056 = vpop.f32.mrb[0].mxu0
        %v1057 = vadd.f32 0.0, %v1056
        %v1058 = vpop.f32.mrb[0].mxu0
        %1059 = vmatprep.mubr.f32.mxu0 0.0
        %1060 = vmatmul.mubr.f32.gmra.mrb[0].mxu0 %v317
        %v1061 = vpop.f32.mrb[0].mxu0
        %v1062 = vadd.f32 0.0, %v1061
        %v1063 = vpop.f32.mrb[0].mxu0
        %1064 = vmatprep.mubr.f32.mxu0 0.0
        %1065 = vmatmul.mubr.f32.gmra.mrb[0].mxu0 %v320
        %v1066 = vpop.f32.mrb[0].mxu0
        %v1067 = vadd.f32 0.0, %v1066
        %v1068 = vpop.f32.mrb[0].mxu0
        %1069 = vmatprep.mubr.f32.mxu0 0.0
        %1070 = vmatmul.mubr.f32.gmra.mrb[0].mxu0 %v323
        %v1071 = vpop.f32.mrb[0].mxu0
        %v1072 = vadd.f32 0.0, %v1071
        %v1073 = vpop.f32.mrb[0].mxu0
        %1074 = vmatprep.mubr.f32.mxu0 0.0
        %1075 = vmatmul.mubr.f32.gmra.mrb[0].mxu0 %v326
        %v1076 = vpop.f32.mrb[0].mxu0
        %v1077 = vadd.f32 0.0, %v1076
        %v1078 = vpop.f32.mrb[0].mxu0
        %1079 = vmatprep.mubr.f32.mxu0 0.0
        %1080 = vmatmul.mubr.f32.gmra.mrb[0].mxu0 %v329
        %v1081 = vpop.f32.mrb[0].mxu0
        %v1082 = vadd.f32 0.0, %v1081
        %v1083 = vpop.f32.mrb[0].mxu0
        %1084 = vmatprep.mubr.f32.mxu0 0.0
        %1085 = vmatmul.mubr.f32.gmra.mrb[0].mxu0 %v332
        %v1086 = vpop.f32.mrb[0].mxu0
        %v1087 = vadd.f32 0.0, %v1086
        %v1088 = vpop.f32.mrb[0].mxu0
        %1089 = vmatprep.mubr.f32.mxu0 0.0
        %1090 = vmatmul.mubr.f32.gmra.mrb[0].mxu0 %v335
        %v1091 = vpop.f32.mrb[0].mxu0
        %v1092 = vadd.f32 0.0, %v1091
        %v1093 = vpop.f32.mrb[0].mxu0
        %1094 = vmatprep.mubr.f32.mxu0 0.0
        %1095 = vmatmul.mubr.f32.gmra.mrb[0].mxu0 %v338
        %v1096 = vpop.f32.mrb[0].mxu0
        %v1097 = vadd.f32 0.0, %v1096
        %v1098 = vpop.f32.mrb[0].mxu0
        %1099 = vmatprep.mubr.f32.mxu0 0.0
        %1100 = vmatmul.mubr.f32.gmra.mrb[0].mxu0 %v341
        %v1101 = vpop.f32.mrb[0].mxu0
        %v1102 = vadd.f32 0.0, %v1101
        %v1103 = vpop.f32.mrb[0].mxu0
        %1104 = vmatprep.mubr.f32.mxu0 0.0
        %1105 = vmatmul.mubr.f32.gmra.mrb[0].mxu0 %v344
        %v1106 = vpop.f32.mrb[0].mxu0
        %v1107 = vadd.f32 0.0, %v1106
        %v1108 = vpop.f32.mrb[0].mxu0
        %1109 = vmatprep.mubr.f32.mxu0 0.0
        %1110 = vmatmul.mubr.f32.gmra.mrb[0].mxu0 %v347
        %v1111 = vpop.f32.mrb[0].mxu0
        %v1112 = vadd.f32 0.0, %v1111
        %v1113 = vpop.f32.mrb[0].mxu0
        %1114 = vmatprep.mubr.f32.mxu0 0.0
        %1115 = vmatmul.mubr.f32.gmra.mrb[0].mxu0 %v350
        %v1116 = vpop.f32.mrb[0].mxu0
        %v1117 = vadd.f32 0.0, %v1116
        %v1118 = vpop.f32.mrb[0].mxu0
        %1119 = vmatprep.mubr.f32.mxu0 0.0
        %1120 = vmatmul.mubr.f32.gmra.mrb[0].mxu0 %v353
        %v1121 = vpop.f32.mrb[0].mxu0
        %v1122 = vadd.f32 0.0, %v1121
        %v1123 = vpop.f32.mrb[0].mxu0
        %1124 = vmatprep.mubr.f32.mxu0 0.0
        %1125 = vmatmul.mubr.f32.gmra.mrb[0].mxu0 %v356
        %v1126 = vpop.f32.mrb[0].mxu0
        %v1127 = vadd.f32 0.0, %v1126
        %v1128 = vpop.f32.mrb[0].mxu0
        %1129 = vmatprep.mubr.f32.mxu0 0.0
        %1130 = vmatmul.mubr.f32.gmra.mrb[0].mxu0 %v359
        %v1131 = vpop.f32.mrb[0].mxu0
        %v1132 = vadd.f32 0.0, %v1131
        %v1133 = vpop.f32.mrb[0].mxu0
        %1134 = vmatprep.mubr.f32.mxu0 0.0
        %1135 = vmatmul.mubr.f32.gmra.mrb[0].mxu0 %v362
        %v1136 = vpop.f32.mrb[0].mxu0
        %v1137 = vadd.f32 0.0, %v1136
        %v1138 = vpop.f32.mrb[0].mxu0
        %1139 = vmatprep.mubr.f32.mxu0 0.0
        %1140 = vmatmul.mubr.f32.gmra.mrb[0].mxu0 %v365
        %v1141 = vpop.f32.mrb[0].mxu0
        %v1142 = vadd.f32 0.0, %v1141
        %v1143 = vpop.f32.mrb[0].mxu0
        %1144 = vmatprep.mubr.f32.mxu0 0.0
        %1145 = vmatmul.mubr.f32.gmra.mrb[0].mxu0 %v368
        %v1146 = vpop.f32.mrb[0].mxu0
        %v1147 = vadd.f32 0.0, %v1146
        %v1148 = vpop.f32.mrb[0].mxu0
        %1149 = vmatprep.mubr.f32.mxu0 0.0
        %1150 = vmatmul.mubr.f32.gmra.mrb[0].mxu0 %v371
        %v1151 = vpop.f32.mrb[0].mxu0
        %v1152 = vadd.f32 0.0, %v1151
        %v1153 = vpop.f32.mrb[0].mxu0
        %1154 = vmatprep.mubr.f32.mxu0 0.0
        %1155 = vmatmul.mubr.f32.gmra.mrb[0].mxu0 %v374
        %v1156 = vpop.f32.mrb[0].mxu0
        %v1157 = vadd.f32 0.0, %v1156
        %v1158 = vpop.f32.mrb[0].mxu0
        %1159 = vmatprep.mubr.f32.mxu0 0.0
        %1160 = vmatmul.mubr.f32.gmra.mrb[0].mxu0 %v377
        %v1161 = vpop.f32.mrb[0].mxu0
        %v1162 = vadd.f32 0.0, %v1161
        %v1163 = vpop.f32.mrb[0].mxu0
        %1164 = vmatprep.mubr.f32.mxu0 0.0
        %1165 = vmatmul.mubr.f32.gmra.mrb[0].mxu0 %v380
        %v1166 = vpop.f32.mrb[0].mxu0
        %v1167 = vadd.f32 0.0, %v1166
        %v1168 = vpop.f32.mrb[0].mxu0
        %1169 = vmatprep.mubr.f32.mxu0 0.0
        %1170 = vmatmul.mubr.f32.gmra.mrb[0].mxu0 %v383
        %v1171 = vpop.f32.mrb[0].mxu0
        %v1172 = vadd.f32 0.0, %v1171
        %v1173 = vpop.f32.mrb[0].mxu0
        %1174 = vmatprep.mubr.f32.mxu0 0.0
        %1175 = vmatmul.mubr.f32.gmra.mrb[0].mxu0 %v386
        %v1176 = vpop.f32.mrb[0].mxu0
        %v1177 = vadd.f32 0.0, %v1176
        %v1178 = vpop.f32.mrb[0].mxu0
        %1179 = vmatprep.mubr.f32.mxu0 0.0
        %1180 = vmatmul.mubr.f32.gmra.mrb[0].mxu0 %v389
        %v1181 = vpop.f32.mrb[0].mxu0
        %v1182 = vadd.f32 0.0, %v1181
        %v1183 = vpop.f32.mrb[0].mxu0
        %1184 = vmatprep.mubr.f32.mxu0 0.0
        %1185 = vmatmul.mubr.f32.gmra.mrb[0].mxu0 %v392
        %v1186 = vpop.f32.mrb[0].mxu0
        %v1187 = vadd.f32 0.0, %v1186
        %v1188 = vpop.f32.mrb[0].mxu0
        %1189 = vmatprep.mubr.f32.mxu0 0.0
        %1190 = vmatmul.mubr.f32.gmra.mrb[0].mxu0 %v395
        %v1191 = vpop.f32.mrb[0].mxu0
        %v1192 = vadd.f32 0.0, %v1191
        %v1193 = vpop.f32.mrb[0].mxu0
        %1194 = vmatprep.mubr.f32.mxu0 0.0
        %1195 = vmatmul.mubr.f32.gmra.mrb[0].mxu0 %v398
        %v1196 = vpop.f32.mrb[0].mxu0
        %v1197 = vadd.f32 0.0, %v1196
        %v1198 = vpop.f32.mrb[0].mxu0
        %1199 = vmatprep.mubr.f32.mxu0 0.0
        %1200 = vmatmul.mubr.f32.gmra.mrb[0].mxu0 %v401
        %v1201 = vpop.f32.mrb[0].mxu0
        %v1202 = vadd.f32 0.0, %v1201
        %v1203 = vpop.f32.mrb[0].mxu0
        %1204 = vdwg.mxu0
        %1205 = vst [vmem:[%s151] sm:$0xff] %v614
        %1206 = vst [vmem:[%s151 + $0x8] sm:$0xff] %v616
        %1207 = vst [vmem:[%s151 + $0x10] sm:$0xff] %v967
        %1208 = vst [vmem:[%s151 + $0x18] sm:$0xff] %v620
        %1209 = vst [vmem:[%s151 + $0x20] sm:$0xff] %v622
        %1210 = vst [vmem:[%s151 + $0x28] sm:$0xff] %v972
        %1211 = vst [vmem:[%s151 + $0x30] sm:$0xff] %v626
        %1212 = vst [vmem:[%s151 + $0x38] sm:$0xff] %v628
        %1213 = vst [vmem:[%s151 + $0x40] sm:$0xff] %v977
        %1214 = vst [vmem:[%s151 + $0x48] sm:$0xff] %v632
        %1215 = vst [vmem:[%s151 + $0x50] sm:$0xff] %v634
        %1216 = vst [vmem:[%s151 + $0x58] sm:$0xff] %v982
        %1217 = vst [vmem:[%s151 + $0x60] sm:$0xff] %v638
        %1218 = vst [vmem:[%s151 + $0x68] sm:$0xff] %v640
        %1219 = vst [vmem:[%s151 + $0x70] sm:$0xff] %v987
        %1220 = vst [vmem:[%s151 + $0x78] sm:$0xff] %v644
        %1221 = vst [vmem:[%s151 + $0x80] sm:$0xff] %v646
        %1222 = vst [vmem:[%s151 + $0x88] sm:$0xff] %v992
        %1223 = vst [vmem:[%s151 + $0x90] sm:$0xff] %v650
        %1224 = vst [vmem:[%s151 + $0x98] sm:$0xff] %v652
        %1225 = vst [vmem:[%s151 + $0xa0] sm:$0xff] %v997
        %1226 = vst [vmem:[%s151 + $0xa8] sm:$0xff] %v656
        %1227 = vst [vmem:[%s151 + $0xb0] sm:$0xff] %v658
        %1228 = vst [vmem:[%s151 + $0xb8] sm:$0xff] %v1002
        %1229 = vst [vmem:[%s151 + $0xc0] sm:$0xff] %v662
        %1230 = vst [vmem:[%s151 + $0xc8] sm:$0xff] %v664
        %1231 = vst [vmem:[%s151 + $0xd0] sm:$0xff] %v1007
        %1232 = vst [vmem:[%s151 + $0xd8] sm:$0xff] %v668
        %1233 = vst [vmem:[%s151 + $0xe0] sm:$0xff] %v670
        %1234 = vst [vmem:[%s151 + $0xe8] sm:$0xff] %v1012
        %1235 = vst [vmem:[%s151 + $0xf0] sm:$0xff] %v674
        %1236 = vst [vmem:[%s151 + $0xf8] sm:$0xff] %v676
        %1237 = vst [vmem:[%s151 + $0x100] sm:$0xff] %v1017
        %1238 = vst [vmem:[%s151 + $0x108] sm:$0xff] %v680
        %1239 = vst [vmem:[%s151 + $0x110] sm:$0xff] %v682
        %1240 = vst [vmem:[%s151 + $0x118] sm:$0xff] %v1022
        %1241 = vst [vmem:[%s151 + $0x120] sm:$0xff] %v686
        %1242 = vst [vmem:[%s151 + $0x128] sm:$0xff] %v688
        %1243 = vst [vmem:[%s151 + $0x130] sm:$0xff] %v1027
        %1244 = vst [vmem:[%s151 + $0x138] sm:$0xff] %v692
        %1245 = vst [vmem:[%s151 + $0x140] sm:$0xff] %v694
        %1246 = vst [vmem:[%s151 + $0x148] sm:$0xff] %v1032
        %1247 = vst [vmem:[%s151 + $0x150] sm:$0xff] %v698
        %1248 = vst [vmem:[%s151 + $0x158] sm:$0xff] %v700
        %1249 = vst [vmem:[%s151 + $0x160] sm:$0xff] %v1037
        %1250 = vst [vmem:[%s151 + $0x168] sm:$0xff] %v704
        %1251 = vst [vmem:[%s151 + $0x170] sm:$0xff] %v706
        %1252 = vst [vmem:[%s151 + $0x178] sm:$0xff] %v1042
        %1253 = vst [vmem:[%s151 + $0x180] sm:$0xff] %v710
        %1254 = vst [vmem:[%s151 + $0x188] sm:$0xff] %v712
        %1255 = vst [vmem:[%s151 + $0x190] sm:$0xff] %v1047
        %1256 = vst [vmem:[%s151 + $0x198] sm:$0xff] %v716
        %1257 = vst [vmem:[%s151 + $0x1a0] sm:$0xff] %v718
        %1258 = vst [vmem:[%s151 + $0x1a8] sm:$0xff] %v1052
        %1259 = vst [vmem:[%s151 + $0x1b0] sm:$0xff] %v722
        %1260 = vst [vmem:[%s151 + $0x1b8] sm:$0xff] %v724
        %1261 = vst [vmem:[%s151 + $0x1c0] sm:$0xff] %v1057
        %1262 = vst [vmem:[%s151 + $0x1c8] sm:$0xff] %v728
        %1263 = vst [vmem:[%s151 + $0x1d0] sm:$0xff] %v730
        %1264 = vst [vmem:[%s151 + $0x1d8] sm:$0xff] %v1062
        %1265 = vst [vmem:[%s151 + $0x1e0] sm:$0xff] %v734
        %1266 = vst [vmem:[%s151 + $0x1e8] sm:$0xff] %v736
        %1267 = vst [vmem:[%s151 + $0x1f0] sm:$0xff] %v1067
        %1268 = vst [vmem:[%s151 + $0x1f8] sm:$0xff] %v740
        %1269 = vst [vmem:[%s151 + $0x200] sm:$0xff] %v742
        %1270 = vst [vmem:[%s151 + $0x208] sm:$0xff] %v1072
        %1271 = vst [vmem:[%s151 + $0x210] sm:$0xff] %v746
        %1272 = vst [vmem:[%s151 + $0x218] sm:$0xff] %v748
        %1273 = vst [vmem:[%s151 + $0x220] sm:$0xff] %v1077
        %1274 = vst [vmem:[%s151 + $0x228] sm:$0xff] %v752
        %1275 = vst [vmem:[%s151 + $0x230] sm:$0xff] %v754
        %1276 = vst [vmem:[%s151 + $0x238] sm:$0xff] %v1082
        %1277 = vst [vmem:[%s151 + $0x240] sm:$0xff] %v758
        %1278 = vst [vmem:[%s151 + $0x248] sm:$0xff] %v760
        %1279 = vst [vmem:[%s151 + $0x250] sm:$0xff] %v1087
        %1280 = vst [vmem:[%s151 + $0x258] sm:$0xff] %v764
        %1281 = vst [vmem:[%s151 + $0x260] sm:$0xff] %v766
        %1282 = vst [vmem:[%s151 + $0x268] sm:$0xff] %v1092
        %1283 = vst [vmem:[%s151 + $0x270] sm:$0xff] %v770
        %1284 = vst [vmem:[%s151 + $0x278] sm:$0xff] %v772
        %1285 = vst [vmem:[%s151 + $0x280] sm:$0xff] %v1097
        %1286 = vst [vmem:[%s151 + $0x288] sm:$0xff] %v776
        %1287 = vst [vmem:[%s151 + $0x290] sm:$0xff] %v778
        %1288 = vst [vmem:[%s151 + $0x298] sm:$0xff] %v1102
        %1289 = vst [vmem:[%s151 + $0x2a0] sm:$0xff] %v782
        %1290 = vst [vmem:[%s151 + $0x2a8] sm:$0xff] %v784
        %1291 = vst [vmem:[%s151 + $0x2b0] sm:$0xff] %v1107
        %1292 = vst [vmem:[%s151 + $0x2b8] sm:$0xff] %v788
        %1293 = vst [vmem:[%s151 + $0x2c0] sm:$0xff] %v790
        %1294 = vst [vmem:[%s151 + $0x2c8] sm:$0xff] %v1112
        %1295 = vst [vmem:[%s151 + $0x2d0] sm:$0xff] %v794
        %1296 = vst [vmem:[%s151 + $0x2d8] sm:$0xff] %v796
        %1297 = vst [vmem:[%s151 + $0x2e0] sm:$0xff] %v1117
        %1298 = vst [vmem:[%s151 + $0x2e8] sm:$0xff] %v800
        %1299 = vst [vmem:[%s151 + $0x2f0] sm:$0xff] %v802
        %1300 = vst [vmem:[%s151 + $0x2f8] sm:$0xff] %v1122
        %1301 = vst [vmem:[%s151 + $0x300] sm:$0xff] %v806
        %1302 = vst [vmem:[%s151 + $0x308] sm:$0xff] %v808
        %1303 = vst [vmem:[%s151 + $0x310] sm:$0xff] %v1127
        %1304 = vst [vmem:[%s151 + $0x318] sm:$0xff] %v812
        %1305 = vst [vmem:[%s151 + $0x320] sm:$0xff] %v814
        %1306 = vst [vmem:[%s151 + $0x328] sm:$0xff] %v1132
        %1307 = vst [vmem:[%s151 + $0x330] sm:$0xff] %v818
        %1308 = vst [vmem:[%s151 + $0x338] sm:$0xff] %v820
        %1309 = vst [vmem:[%s151 + $0x340] sm:$0xff] %v1137
        %1310 = vst [vmem:[%s151 + $0x348] sm:$0xff] %v824
        %1311 = vst [vmem:[%s151 + $0x350] sm:$0xff] %v826
        %1312 = vst [vmem:[%s151 + $0x358] sm:$0xff] %v1142
        %1313 = vst [vmem:[%s151 + $0x360] sm:$0xff] %v830
        %1314 = vst [vmem:[%s151 + $0x368] sm:$0xff] %v832
        %1315 = vst [vmem:[%s151 + $0x370] sm:$0xff] %v1147
        %1316 = vst [vmem:[%s151 + $0x378] sm:$0xff] %v836
        %1317 = vst [vmem:[%s151 + $0x380] sm:$0xff] %v838
        %1318 = vst [vmem:[%s151 + $0x388] sm:$0xff] %v1152
        %1319 = vst [vmem:[%s151 + $0x390] sm:$0xff] %v842
        %1320 = vst [vmem:[%s151 + $0x398] sm:$0xff] %v844
        %1321 = vst [vmem:[%s151 + $0x3a0] sm:$0xff] %v1157
        %1322 = vst [vmem:[%s151 + $0x3a8] sm:$0xff] %v848
        %1323 = vst [vmem:[%s151 + $0x3b0] sm:$0xff] %v850
        %1324 = vst [vmem:[%s151 + $0x3b8] sm:$0xff] %v1162
        %1325 = vst [vmem:[%s151 + $0x3c0] sm:$0xff] %v854
        %1326 = vst [vmem:[%s151 + $0x3c8] sm:$0xff] %v856
        %1327 = vst [vmem:[%s151 + $0x3d0] sm:$0xff] %v1167
        %1328 = vst [vmem:[%s151 + $0x3d8] sm:$0xff] %v860
        %1329 = vst [vmem:[%s151 + $0x3e0] sm:$0xff] %v862
        %1330 = vst [vmem:[%s151 + $0x3e8] sm:$0xff] %v1172
        %1331 = vst [vmem:[%s151 + $0x3f0] sm:$0xff] %v866
        %1332 = vst [vmem:[%s151 + $0x3f8] sm:$0xff] %v868
        %1333 = vst [vmem:[%s151 + $0x400] sm:$0xff] %v1177
        %1334 = vst [vmem:[%s151 + $0x408] sm:$0xff] %v872
        %1335 = vst [vmem:[%s151 + $0x410] sm:$0xff] %v874
        %1336 = vst [vmem:[%s151 + $0x418] sm:$0xff] %v1182
        %1337 = vst [vmem:[%s151 + $0x420] sm:$0xff] %v878
        %1338 = vst [vmem:[%s151 + $0x428] sm:$0xff] %v880
        %1339 = vst [vmem:[%s151 + $0x430] sm:$0xff] %v1187
        %1340 = vst [vmem:[%s151 + $0x438] sm:$0xff] %v884
        %1341 = vst [vmem:[%s151 + $0x440] sm:$0xff] %v886
        %1342 = vst [vmem:[%s151 + $0x448] sm:$0xff] %v1192
        %1343 = vst [vmem:[%s151 + $0x450] sm:$0xff] %v890
        %1344 = vst [vmem:[%s151 + $0x458] sm:$0xff] %v892
        %1345 = vst [vmem:[%s151 + $0x460] sm:$0xff] %v1197
        %1346 = vst [vmem:[%s151 + $0x468] sm:$0xff] %v896
        %1347 = vst [vmem:[%s151 + $0x470] sm:$0xff] %v898
        %1348 = vst [vmem:[%s151 + $0x478] sm:$0xff] %v1202
        %s1349 = sand.u32 %s76, 1
        %s1350 = scalar_lea.sflag [#allocation3], %s1349
        %s1351 = sand.u32 %s76, 1
        %s1352 = smul.addr %s1351, 1152
        %s1353 = scalar_lea.vmem [#allocation2], %s1352
        // Predicated region
        $region29: #{tpu_custom_call.1} parent=27 // pred_check
          %p1354 = pneg %p86
        $region30: #{tpu_custom_call.1} parent=27 // pred_check_branch
          %1356 = sbr.rel (%p1354) target = $region32
        $region31: #{tpu_custom_call.1} parent=27 // pred_region
          %s1358 = ssub.s32 18432, 18432
          %1359 = vsyncadd %s1350, %s1358
          %s1360 = smul.addr %s16, 144
          %s1361 = smul.addr %s1360, 128
          %s1362 = scalar_lea.hbm %s2, %s1361
          %s1363 = sshll.u32 %s1353, 4
          %s1364 = int_to_ptr.vmem [resolvable:$true] %s1363
          %1369 = dma.vmem_to_hbm [thread:$0]  %s1364, 18432, %s1362, %s1350, 384, 384, 24
        $region32: #{tpu_custom_call.1} parent=27 // pred_fallthru
          _
      $region28: #{tpu_custom_call.1} parent=5 // pred_fallthru
        _
      %p1370 = scmp.le.s32.totalorder 2, %s11
      // Predicated region
      $region33: #{tpu_custom_call.1} parent=5 // pred_check
        %p1371 = pneg %p1370
      $region34: #{tpu_custom_call.1} parent=5 // pred_check_branch
        %1373 = sbr.rel (%p1371) target = $region36
      $region35: #{tpu_custom_call.1} parent=5 // pred_region
        %s1374 = ssub.s32 %s11, 2
        // Predicated region
        $region37: #{tpu_custom_call.1} parent=35 // pred_check
          %p1375 = pneg %p92
        $region38: #{tpu_custom_call.1} parent=35 // pred_check_branch
          %1377 = sbr.rel (%p1375) target = $region40
        $region39: #{tpu_custom_call.1} parent=35 // pred_region
          %s1378 = sand.u32 %s77, 1
          %s1379 = scalar_lea.sflag [#allocation3], %s1378
          %s1380 = sand.u32 %s77, 1
          %s1381 = smul.addr %s1380, 1152
          %s1382 = scalar_lea.vmem [#allocation2], %s1381
          %1383 = dma.done %s1379, 18432
        $region40: #{tpu_custom_call.1} parent=35 // pred_fallthru
          _
      $region36: #{tpu_custom_call.1} parent=5 // pred_fallthru
        _
    $region6: #{tpu_custom_call.1} parent=1 // loop_footer
      %s15 = sadd.s32 1, %s11
    $region7: #{tpu_custom_call.1} parent=1 // loop_footer_branch
      %10 = sbr.rel target = $region3
    $region8: #{tpu_custom_call.1} parent=1 // loop_exit
      _
    %1384 = vsyncpa [#allocation3], 1
    %s1385 = scalar_lea.sflag [#allocation3], 1
    %1386 = vsyncpa %s1385, 1

</llo_original>
